<compile_context>
chip_gen: v6e
topology: v6e:2x2x1
jax: 0.10.0
libtpu: 0.0.40
codegen_flags: <defaults>
</compile_context>

<pallas_src>
import jax
import jax.numpy as jnp
from jax.experimental import pallas as pl
from jax.experimental.pallas import tpu as pltpu

LANE = 128
SUBLANE = 8


def _round_up(a, m):
    return -(-a // m) * m


def _cdiv(a, b):
    return -(-a // b)


def _tpu_config():
    """(num_tensorcores, max_tile_rows, vmem_limit_bytes or None).

    Conservative fallback (unknown chip): single core, 1024-row tiles,
    default scoped-VMEM limit -- the configuration already known to run clean.
    """
    kind = ""
    try:
        kind = jax.devices()[0].device_kind.lower()
    except Exception:
        pass
    if "v7" in kind or "7x" in kind:
        # 2 TCs, ~3.2 TB/s per TC: 4096x128 f32 tiles (2 MiB/buffer, 8 MiB
        # total double-buffered) amortize the ~0.35 us per-grid-step overhead.
        return 2, 4096, 32 * 1024 * 1024
    if "v6" in kind:
        # Single TC, ~1.4 TB/s: 2048-row tiles (4 MiB double-buffered).
        return 1, 2048, None
    # v5e / unknown: 1024-row tiles already sit ~85% of the 820 GB/s roofline
    # and fit comfortably inside the 16 MiB scoped-VMEM default.
    return 1, 1024, None


def _sublane_multiple(dtype):
    """Second-to-last block-dim granularity for (packed) dtypes."""
    itemsize = jnp.dtype(dtype).itemsize
    return SUBLANE * max(1, 4 // itemsize)  # f32 -> 8, bf16 -> 16, int8 -> 32


def _make_kernel(n_valid, tile_rows, tiles_per_split):
    """Streaming reduction: per split accumulate three (8,128) partials:
       [0] sum(sigmoid(x)*t)   [1] sum(sigmoid(x))   [2] sum(t)
    The ragged tail (lane padding + out-of-bounds rows of the edge block) is
    masked with an iota compare only on the tile that contains it.
    """
    groups = tile_rows // SUBLANE
    tile_elems = tile_rows * LANE

    def kernel(x_ref, t_ref, out_ref):
        c = pl.program_id(0)
        i = pl.program_id(1)

        @pl.when(i == 0)
        def _():
            out_ref[...] = jnp.zeros_like(out_ref)

        # Cast after the load (inputs stream in native dtype); sigmoid as one
        # EUP tanh push + two VALU ops (VALU has slack; EUP is the scarce slot
        # once bandwidth rises on v7x / bf16 inputs).
        xf = x_ref[...].astype(jnp.float32)
        x = jnp.tanh(xf * 0.5) * 0.5 + 0.5
        t = t_ref[...].astype(jnp.float32)

        def accumulate(xv, tv):
            xr = xv.reshape(groups, SUBLANE, LANE)
            tr = tv.reshape(groups, SUBLANE, LANE)
            out_ref[0, 0] += jnp.sum(xr * tr, axis=0)   # partial sum(sig(x)*t)
            out_ref[0, 1] += jnp.sum(xr, axis=0)        # partial sum(sig(x))
            out_ref[0, 2] += jnp.sum(tr, axis=0)        # partial sum(t)

        # Intended (un-clamped) flat element range of this grid step.
        tile_start = (c * tiles_per_split + i) * tile_elems
        is_tail = tile_start + tile_elems > n_valid

        @pl.when(jnp.logical_not(is_tail))
        def _():
            accumulate(x, t)                            # fast path: no mask

        @pl.when(is_tail)
        def _():
            row_ids = jax.lax.broadcasted_iota(jnp.int32, (tile_rows, LANE), 0)
            lane_ids = jax.lax.broadcasted_iota(jnp.int32, (tile_rows, LANE), 1)
            flat = tile_start + row_ids * LANE + lane_ids
            mask = flat < n_valid
            accumulate(jnp.where(mask, x, 0.0), jnp.where(mask, t, 0.0))

    return kernel


def tversky_loss(inputs, targets, alpha_t=0.5, beta_t=0.5, smooth=1.0):
    """Equivalent of TverskyLoss.forward(inputs, targets)."""
    x = jnp.reshape(inputs, (-1,))
    t = jnp.reshape(targets, (-1,))
    n = x.shape[0]

    num_cores, max_tile_rows, vmem_limit = _tpu_config()
    sub_mult = max(_sublane_multiple(x.dtype), _sublane_multiple(t.dtype))

    # Rows of 128 lanes. Only pad up to the next lane multiple (required for
    # the 2-D reshape); all other raggedness is masked inside the kernel.
    rows = max(1, _cdiv(n, LANE))
    n_lanepad = rows * LANE
    if n_lanepad != n:
        # TODO(synk): a 1-D block layout would avoid even this small pad copy
        # for element counts that are not a multiple of 128.
        x = jnp.pad(x, (0, n_lanepad - n))
        t = jnp.pad(t, (0, n_lanepad - n))
    x2 = x.reshape(rows, LANE)
    t2 = t.reshape(rows, LANE)

    tile_rows = min(max_tile_rows, _round_up(rows, sub_mult))
    total_tiles = _cdiv(rows, tile_rows)

    num_splits = max(1, min(num_cores, total_tiles))
    tiles_per_split = _cdiv(total_tiles, num_splits)

    def in_map(c, i):
        tile = c * tiles_per_split + i
        # Phantom grid steps (splits rounded up to tiles_per_split) are
        # clamped onto the last real tile; the kernel masks them to zero.
        return (jnp.minimum(tile, total_tiles - 1), 0)

    if num_splits > 1:
        sem = (getattr(pltpu, "CORE_PARALLEL", "parallel"),
               getattr(pltpu, "ARBITRARY", "arbitrary"))
    else:
        sem = ("arbitrary", "arbitrary")
    cp_kwargs = dict(dimension_semantics=sem)
    if vmem_limit is not None:
        cp_kwargs["vmem_limit_bytes"] = vmem_limit

    partials = pl.pallas_call(
        _make_kernel(n, tile_rows, tiles_per_split),
        out_shape=jax.ShapeDtypeStruct((num_splits, 3, SUBLANE, LANE),
                                       jnp.float32),
        grid_spec=pltpu.PrefetchScalarGridSpec(
            num_scalar_prefetch=0,
            grid=(num_splits, tiles_per_split),
            in_specs=[
                pl.BlockSpec((tile_rows, LANE), in_map),
                pl.BlockSpec((tile_rows, LANE), in_map),
            ],
            out_specs=pl.BlockSpec((1, 3, SUBLANE, LANE),
                                   lambda c, i: (c, 0, 0, 0)),
        ),
        compiler_params=pltpu.CompilerParams(**cp_kwargs),
    )(x2, t2)

    # Combine per-core partials + single cross-lane reduce, then the formula.
    sums = jnp.sum(partials, axis=(0, 2, 3))       # [S_xt, S_x, S_t]
    s_xt, s_x, s_t = sums[0], sums[1], sums[2]
    tp = s_xt
    fp = s_x - s_xt                                # == sum((1 - t) * sigmoid(x))
    fn = s_t - s_xt                                # == sum(t * (1 - sigmoid(x)))
    tversky = (tp + smooth) / (tp + alpha_t * fp + beta_t * fn + smooth)
    return 1.0 - tversky


def tversky_loss_ref(inputs, targets, alpha_t=0.5, beta_t=0.5, smooth=1.0):
    x = jax.nn.sigmoid(jnp.reshape(inputs, (-1,)).astype(jnp.float32))
    t = jnp.reshape(targets, (-1,)).astype(jnp.float32)
    TP = jnp.sum(x * t)
    FP = jnp.sum((1.0 - t) * x)
    FN = jnp.sum(t * (1.0 - x))
    tversky = (TP + smooth) / (TP + alpha_t * FP + beta_t * FN + smooth)
    return 1.0 - tversky


if __name__ == "__main__":
    key = jax.random.PRNGKey(0)
    k1, k2, k3, k4 = jax.random.split(key, 4)

    # NCHW segmentation-logits case: (batch=2, C=4, H=16, W=16)
    x = jax.random.normal(k1, (2, 4, 16, 16), dtype=jnp.float32)
    tgt = (jax.random.uniform(k2, (2, 4, 16, 16)) > 0.5).astype(jnp.float32)

    loss = jax.block_until_ready(tversky_loss(x, tgt))
    ref = jax.block_until_ready(tversky_loss_ref(x, tgt))
    assert jnp.allclose(loss, ref, atol=1e-5, rtol=1e-5), (loss, ref)

    # Ragged size (n % 128 != 0): exercises the in-kernel tail mask and the
    # partial edge block, with non-default alpha/beta.
    x2 = jax.random.normal(k3, (3, 5, 17, 13), dtype=jnp.float32)
    t2 = (jax.random.uniform(k4, (3, 5, 17, 13)) > 0.5).astype(jnp.float32)
    loss2 = jax.block_until_ready(tversky_loss(x2, t2, alpha_t=0.7, beta_t=0.3))
    ref2 = jax.block_until_ready(tversky_loss_ref(x2, t2, alpha_t=0.7, beta_t=0.3))
    assert jnp.allclose(loss2, ref2, atol=1e-5, rtol=1e-5), (loss2, ref2)

    # bf16 logits: native-dtype streaming (half the HBM bytes), cast in-kernel,
    # tile_rows rounded to the packed (16, 128) granularity.
    x3 = x.astype(jnp.bfloat16)
    loss3 = jax.block_until_ready(tversky_loss(x3, tgt))
    ref3 = jax.block_until_ready(tversky_loss_ref(x3, tgt))
    assert jnp.allclose(loss3, ref3, atol=1e-4, rtol=1e-4), (loss3, ref3)

    print("KERNEL_OK")
</pallas_src>

<mosaic_0001>
module attributes {stable_mosaic.version = 11 : i64} {
  func.func @kernel(%arg0: i32, %arg1: i32, %arg2: memref<16x128xf32, #tpu.memory_space<vmem>>, %arg3: memref<16x128xf32, #tpu.memory_space<vmem>>, %arg4: memref<1x3x8x128xf32, #tpu.memory_space<vmem>>) attributes {dimension_semantics = [#tpu.dimension_semantics<arbitrary>, #tpu.dimension_semantics<arbitrary>], iteration_bounds = array<i64: 1, 1>, scalar_prefetch = 0 : i64, scratch_operands = 0 : i64, tpu.core_type = #tpu.core_type<tc>, window_params = [{transform_indices = @transform_0, window_bounds = array<i64: 16, 128>}, {transform_indices = @transform_1, window_bounds = array<i64: 16, 128>}, {transform_indices = @transform_2, window_bounds = array<i64: 1, 3, 8, 128>}]} {
    %c0_i32 = arith.constant 0 : i32
    %0 = arith.cmpi eq, %arg1, %c0_i32 : i32
    %1 = arith.extui %0 : i1 to i32
    %c0_i32_0 = arith.constant 0 : i32
    %2 = arith.cmpi ne, %1, %c0_i32_0 : i32
    scf.if %2 {
      %cst_10 = arith.constant 0.000000e+00 : f32
      %22 = vector.broadcast %cst_10 : f32 to vector<1x3x8x128xf32>
      %c0_11 = arith.constant 0 : index
      %c0_12 = arith.constant 0 : index
      %c0_13 = arith.constant 0 : index
      %c0_14 = arith.constant 0 : index
      %23 = vector.load %arg4[%c0_11, %c0_12, %c0_13, %c0_14] : memref<1x3x8x128xf32, #tpu.memory_space<vmem>>, vector<1x3x8x128xf32>
      tpu.vector_store %arg4[%c0_11, %c0_12, %c0_13, %c0_14], %22 {strides = array<i32>} : memref<1x3x8x128xf32, #tpu.memory_space<vmem>>, vector<1x3x8x128xf32>,
    } else {
    }
    %c0 = arith.constant 0 : index
    %c0_1 = arith.constant 0 : index
    %3 = vector.load %arg2[%c0, %c0_1] : memref<16x128xf32, #tpu.memory_space<vmem>>, vector<16x128xf32>
    %cst = arith.constant 5.000000e-01 : f32
    %4 = vector.broadcast %cst : f32 to vector<16x128xf32>
    %5 = arith.mulf %3, %4 : vector<16x128xf32>
    %6 = math.tanh %5 : vector<16x128xf32>
    %cst_2 = arith.constant 5.000000e-01 : f32
    %7 = vector.broadcast %cst_2 : f32 to vector<16x128xf32>
    %8 = arith.mulf %6, %7 : vector<16x128xf32>
    %cst_3 = arith.constant 5.000000e-01 : f32
    %9 = vector.broadcast %cst_3 : f32 to vector<16x128xf32>
    %10 = arith.addf %8, %9 : vector<16x128xf32>
    %c0_4 = arith.constant 0 : index
    %c0_5 = arith.constant 0 : index
    %11 = vector.load %arg3[%c0_4, %c0_5] : memref<16x128xf32, #tpu.memory_space<vmem>>, vector<16x128xf32>
    %c1_i32 = arith.constant 1 : i32
    %12 = arith.muli %arg0, %c1_i32 : i32
    %13 = arith.addi %12, %arg1 : i32
    %c2048_i32 = arith.constant 2048 : i32
    %14 = arith.muli %13, %c2048_i32 : i32
    %c2048_i32_6 = arith.constant 2048 : i32
    %15 = arith.addi %14, %c2048_i32_6 : i32
    %c2048_i32_7 = arith.constant 2048 : i32
    %16 = arith.cmpi sgt, %15, %c2048_i32_7 : i32
    %true = arith.constant true
    %17 = arith.xori %16, %true : i1
    %18 = arith.extui %17 : i1 to i32
    %c0_i32_8 = arith.constant 0 : i32
    %19 = arith.cmpi ne, %18, %c0_i32_8 : i32
    scf.if %19 {
      %22 = vector.shape_cast %10 : vector<16x128xf32> to vector<2x8x128xf32>
      %23 = vector.shape_cast %11 : vector<16x128xf32> to vector<2x8x128xf32>
      %c0_10 = arith.constant 0 : index
      %c0_11 = arith.constant 0 : index
      %c0_12 = arith.constant 0 : index
      %c0_13 = arith.constant 0 : index
      %24 = vector.load %arg4[%c0_10, %c0_11, %c0_12, %c0_13] : memref<1x3x8x128xf32, #tpu.memory_space<vmem>>, vector<1x1x8x128xf32>
      %25 = vector.shape_cast %24 : vector<1x1x8x128xf32> to vector<8x128xf32>
      %26 = arith.mulf %22, %23 : vector<2x8x128xf32>
      %cst_14 = arith.constant dense<0.000000e+00> : vector<8x128xf32>
      %27 = vector.multi_reduction <add>, %26, %cst_14 [0] : vector<2x8x128xf32> to vector<8x128xf32>
      %28 = arith.addf %25, %27 : vector<8x128xf32>
      %c0_15 = arith.constant 0 : index
      %c0_16 = arith.constant 0 : index
      %c0_17 = arith.constant 0 : index
      %c0_18 = arith.constant 0 : index
      %29 = vector.load %arg4[%c0_15, %c0_16, %c0_17, %c0_18] : memref<1x3x8x128xf32, #tpu.memory_space<vmem>>, vector<1x1x8x128xf32>
      %30 = vector.shape_cast %29 : vector<1x1x8x128xf32> to vector<8x128xf32>
      %31 = vector.shape_cast %28 : vector<8x128xf32> to vector<1x1x8x128xf32>
      tpu.vector_store %arg4[%c0_15, %c0_16, %c0_17, %c0_18], %31 {strides = array<i32>} : memref<1x3x8x128xf32, #tpu.memory_space<vmem>>, vector<1x1x8x128xf32>,
      %c0_19 = arith.constant 0 : index
      %c1 = arith.constant 1 : index
      %c0_20 = arith.constant 0 : index
      %c0_21 = arith.constant 0 : index
      %32 = vector.load %arg4[%c0_19, %c1, %c0_20, %c0_21] : memref<1x3x8x128xf32, #tpu.memory_space<vmem>>, vector<1x1x8x128xf32>
      %33 = vector.shape_cast %32 : vector<1x1x8x128xf32> to vector<8x128xf32>
      %cst_22 = arith.constant dense<0.000000e+00> : vector<8x128xf32>
      %34 = vector.multi_reduction <add>, %22, %cst_22 [0] : vector<2x8x128xf32> to vector<8x128xf32>
      %35 = arith.addf %33, %34 : vector<8x128xf32>
      %c0_23 = arith.constant 0 : index
      %c1_24 = arith.constant 1 : index
      %c0_25 = arith.constant 0 : index
      %c0_26 = arith.constant 0 : index
      %36 = vector.load %arg4[%c0_23, %c1_24, %c0_25, %c0_26] : memref<1x3x8x128xf32, #tpu.memory_space<vmem>>, vector<1x1x8x128xf32>
      %37 = vector.shape_cast %36 : vector<1x1x8x128xf32> to vector<8x128xf32>
      %38 = vector.shape_cast %35 : vector<8x128xf32> to vector<1x1x8x128xf32>
      tpu.vector_store %arg4[%c0_23, %c1_24, %c0_25, %c0_26], %38 {strides = array<i32>} : memref<1x3x8x128xf32, #tpu.memory_space<vmem>>, vector<1x1x8x128xf32>,
      %c0_27 = arith.constant 0 : index
      %c2 = arith.constant 2 : index
      %c0_28 = arith.constant 0 : index
      %c0_29 = arith.constant 0 : index
      %39 = vector.load %arg4[%c0_27, %c2, %c0_28, %c0_29] : memref<1x3x8x128xf32, #tpu.memory_space<vmem>>, vector<1x1x8x128xf32>
      %40 = vector.shape_cast %39 : vector<1x1x8x128xf32> to vector<8x128xf32>
      %cst_30 = arith.constant dense<0.000000e+00> : vector<8x128xf32>
      %41 = vector.multi_reduction <add>, %23, %cst_30 [0] : vector<2x8x128xf32> to vector<8x128xf32>
      %42 = arith.addf %40, %41 : vector<8x128xf32>
      %c0_31 = arith.constant 0 : index
      %c2_32 = arith.constant 2 : index
      %c0_33 = arith.constant 0 : index
      %c0_34 = arith.constant 0 : index
      %43 = vector.load %arg4[%c0_31, %c2_32, %c0_33, %c0_34] : memref<1x3x8x128xf32, #tpu.memory_space<vmem>>, vector<1x1x8x128xf32>
      %44 = vector.shape_cast %43 : vector<1x1x8x128xf32> to vector<8x128xf32>
      %45 = vector.shape_cast %42 : vector<8x128xf32> to vector<1x1x8x128xf32>
      tpu.vector_store %arg4[%c0_31, %c2_32, %c0_33, %c0_34], %45 {strides = array<i32>} : memref<1x3x8x128xf32, #tpu.memory_space<vmem>>, vector<1x1x8x128xf32>,
    } else {
    }
    %20 = arith.extui %16 : i1 to i32
    %c0_i32_9 = arith.constant 0 : i32
    %21 = arith.cmpi ne, %20, %c0_i32_9 : i32
    scf.if %21 {
      %22 = tpu.iota {dimensions = array<i32: 0>} : vector<16x128xi32>
      %23 = tpu.iota {dimensions = array<i32: 1>} : vector<16x128xi32>
      %c128_i32 = arith.constant 128 : i32
      %24 = vector.broadcast %c128_i32 : i32 to vector<16x128xi32>
      %25 = arith.muli %22, %24 : vector<16x128xi32>
      %26 = vector.broadcast %14 : i32 to vector<16x128xi32>
      %27 = arith.addi %26, %25 : vector<16x128xi32>
      %28 = arith.addi %27, %23 : vector<16x128xi32>
      %c2048_i32_10 = arith.constant 2048 : i32
      %29 = vector.broadcast %c2048_i32_10 : i32 to vector<16x128xi32>
      %30 = arith.cmpi slt, %28, %29 : vector<16x128xi32>
      %cst_11 = arith.constant 0.000000e+00 : f32
      %31 = vector.broadcast %cst_11 : f32 to vector<16x128xf32>
      %32 = arith.select %30, %10, %31 : vector<16x128xi1>, vector<16x128xf32>
      %cst_12 = arith.constant 0.000000e+00 : f32
      %33 = vector.broadcast %cst_12 : f32 to vector<16x128xf32>
      %34 = arith.select %30, %11, %33 : vector<16x128xi1>, vector<16x128xf32>
      %35 = vector.shape_cast %32 : vector<16x128xf32> to vector<2x8x128xf32>
      %36 = vector.shape_cast %34 : vector<16x128xf32> to vector<2x8x128xf32>
      %c0_13 = arith.constant 0 : index
      %c0_14 = arith.constant 0 : index
      %c0_15 = arith.constant 0 : index
      %c0_16 = arith.constant 0 : index
      %37 = vector.load %arg4[%c0_13, %c0_14, %c0_15, %c0_16] : memref<1x3x8x128xf32, #tpu.memory_space<vmem>>, vector<1x1x8x128xf32>
      %38 = vector.shape_cast %37 : vector<1x1x8x128xf32> to vector<8x128xf32>
      %39 = arith.mulf %35, %36 : vector<2x8x128xf32>
      %cst_17 = arith.constant dense<0.000000e+00> : vector<8x128xf32>
      %40 = vector.multi_reduction <add>, %39, %cst_17 [0] : vector<2x8x128xf32> to vector<8x128xf32>
      %41 = arith.addf %38, %40 : vector<8x128xf32>
      %c0_18 = arith.constant 0 : index
      %c0_19 = arith.constant 0 : index
      %c0_20 = arith.constant 0 : index
      %c0_21 = arith.constant 0 : index
      %42 = vector.load %arg4[%c0_18, %c0_19, %c0_20, %c0_21] : memref<1x3x8x128xf32, #tpu.memory_space<vmem>>, vector<1x1x8x128xf32>
      %43 = vector.shape_cast %42 : vector<1x1x8x128xf32> to vector<8x128xf32>
      %44 = vector.shape_cast %41 : vector<8x128xf32> to vector<1x1x8x128xf32>
      tpu.vector_store %arg4[%c0_18, %c0_19, %c0_20, %c0_21], %44 {strides = array<i32>} : memref<1x3x8x128xf32, #tpu.memory_space<vmem>>, vector<1x1x8x128xf32>,
      %c0_22 = arith.constant 0 : index
      %c1 = arith.constant 1 : index
      %c0_23 = arith.constant 0 : index
      %c0_24 = arith.constant 0 : index
      %45 = vector.load %arg4[%c0_22, %c1, %c0_23, %c0_24] : memref<1x3x8x128xf32, #tpu.memory_space<vmem>>, vector<1x1x8x128xf32>
      %46 = vector.shape_cast %45 : vector<1x1x8x128xf32> to vector<8x128xf32>
      %cst_25 = arith.constant dense<0.000000e+00> : vector<8x128xf32>
      %47 = vector.multi_reduction <add>, %35, %cst_25 [0] : vector<2x8x128xf32> to vector<8x128xf32>
      %48 = arith.addf %46, %47 : vector<8x128xf32>
      %c0_26 = arith.constant 0 : index
      %c1_27 = arith.constant 1 : index
      %c0_28 = arith.constant 0 : index
      %c0_29 = arith.constant 0 : index
      %49 = vector.load %arg4[%c0_26, %c1_27, %c0_28, %c0_29] : memref<1x3x8x128xf32, #tpu.memory_space<vmem>>, vector<1x1x8x128xf32>
      %50 = vector.shape_cast %49 : vector<1x1x8x128xf32> to vector<8x128xf32>
      %51 = vector.shape_cast %48 : vector<8x128xf32> to vector<1x1x8x128xf32>
      tpu.vector_store %arg4[%c0_26, %c1_27, %c0_28, %c0_29], %51 {strides = array<i32>} : memref<1x3x8x128xf32, #tpu.memory_space<vmem>>, vector<1x1x8x128xf32>,
      %c0_30 = arith.constant 0 : index
      %c2 = arith.constant 2 : index
      %c0_31 = arith.constant 0 : index
      %c0_32 = arith.constant 0 : index
      %52 = vector.load %arg4[%c0_30, %c2, %c0_31, %c0_32] : memref<1x3x8x128xf32, #tpu.memory_space<vmem>>, vector<1x1x8x128xf32>
      %53 = vector.shape_cast %52 : vector<1x1x8x128xf32> to vector<8x128xf32>
      %cst_33 = arith.constant dense<0.000000e+00> : vector<8x128xf32>
      %54 = vector.multi_reduction <add>, %36, %cst_33 [0] : vector<2x8x128xf32> to vector<8x128xf32>
      %55 = arith.addf %53, %54 : vector<8x128xf32>
      %c0_34 = arith.constant 0 : index
      %c2_35 = arith.constant 2 : index
      %c0_36 = arith.constant 0 : index
      %c0_37 = arith.constant 0 : index
      %56 = vector.load %arg4[%c0_34, %c2_35, %c0_36, %c0_37] : memref<1x3x8x128xf32, #tpu.memory_space<vmem>>, vector<1x1x8x128xf32>
      %57 = vector.shape_cast %56 : vector<1x1x8x128xf32> to vector<8x128xf32>
      %58 = vector.shape_cast %55 : vector<8x128xf32> to vector<1x1x8x128xf32>
      tpu.vector_store %arg4[%c0_34, %c2_35, %c0_36, %c0_37], %58 {strides = array<i32>} : memref<1x3x8x128xf32, #tpu.memory_space<vmem>>, vector<1x1x8x128xf32>,
    } else {
    }
    return
  }
  func.func @transform_0(%arg0: i32, %arg1: i32) -> (i32, i32) {
    %c1_i32 = arith.constant 1 : i32
    %0 = arith.muli %arg0, %c1_i32 : i32
    %1 = arith.addi %0, %arg1 : i32
    %c0_i32 = arith.constant 0 : i32
    %2 = arith.minsi %1, %c0_i32 : i32
    %c0_i32_0 = arith.constant 0 : i32
    %c0_i32_1 = arith.constant 0 : i32
    return %2, %c0_i32_0 : i32, i32
  }
  func.func @transform_1(%arg0: i32, %arg1: i32) -> (i32, i32) {
    %c1_i32 = arith.constant 1 : i32
    %0 = arith.muli %arg0, %c1_i32 : i32
    %1 = arith.addi %0, %arg1 : i32
    %c0_i32 = arith.constant 0 : i32
    %2 = arith.minsi %1, %c0_i32 : i32
    %c0_i32_0 = arith.constant 0 : i32
    %c0_i32_1 = arith.constant 0 : i32
    return %2, %c0_i32_0 : i32, i32
  }
  func.func @transform_2(%arg0: i32, %arg1: i32) -> (i32, i32, i32, i32) {
    %c0_i32 = arith.constant 0 : i32
    %c0_i32_0 = arith.constant 0 : i32
    %c0_i32_1 = arith.constant 0 : i32
    %c0_i32_2 = arith.constant 0 : i32
    return %arg0, %c0_i32, %c0_i32_0, %c0_i32_1 : i32, i32, i32, i32
  }
}

</mosaic_0001>

<llo_original>
// kernel: tpu_custom_call.1
$region0: #{tpu_custom_call.1}
  #allocation0 [shape = 'u32[]', space=smem, size = 0x4, offset = 0x4, fixed_abs, tag = 'smem constant byte address 0x4 - core index']
  #allocation1 [shape = 'u32[144,128]{1,0:T(1,128)}', space=vmem, size = 0x12000, scoped, tag = 'internal scratch']
  %s0 = inlined_call_operand.hbm [shape: f32[16,128], index: 0, kind: input, shape index: {}]
  %s1 = inlined_call_operand.hbm [shape: f32[16,128], index: 1, kind: input, shape index: {}]
  %s2 = inlined_call_operand.hbm [shape: f32[1,3,8,128], index: 2, kind: output, shape index: {}]
  %s3 = sld [smem:[#allocation0]]
  $region38: #{tpu_custom_call.1} parent=0
    _
  %s5 = ssub.s32 1, %s3
  %s6 = scalar_select 0, %s5, %s3
  $region1: #{tpu_custom_call.1} parent=0
    #allocation2 [shape = 'u8[8192]{0}', space=vmem, size = 0x2000, scoped, tag = 'input window, operand 0, single buffered']
    #allocation3 [shape = 's32[1]{0}', space=sflag, size = 0x4, scoped, tag = 'scoped memory for tpu_custom_call.1']
    #allocation4 [shape = 's32[1]{0}', space=sflag, size = 0x4, scoped, tag = 'scoped memory for tpu_custom_call.1']
    #allocation5 [shape = 'u8[8192]{0}', space=vmem, size = 0x2000, scoped, tag = 'input window, operand 1, single buffered']
    #allocation6 [shape = 's32[1]{0}', space=sflag, size = 0x4, scoped, tag = 'scoped memory for tpu_custom_call.1']
    #allocation7 [shape = 'u8[12288]{0}', space=vmem, size = 0x3000, scoped, tag = 'output window, operand 0, single buffered']
    %7 = vsyncpa [#allocation3], 0
    %8 = vsyncpa [#allocation6], 0
    %9 = vsyncpa [#allocation4], 0
    // Predicated region
    $region2: #{tpu_custom_call.1} parent=1 // pred_check
      _
    $region3: #{tpu_custom_call.1} parent=1 // pred_check_branch
      %11 = sbr.rel (0) target = $region5
    $region4: #{tpu_custom_call.1} parent=1 // pred_region
      %s12 = sadd.s32 0, 0
      %p13 = scmp.lt.s32.totalorder %s12, 0
      %s14 = scalar_select %p13, %s12, 0
      %s15 = smul.u32 2, %s14
      %s17 = ssub.s32 256, 256
      %18 = vsyncadd [#allocation3], %s17
      %s19 = smul.addr %s15, 128
      %s20 = scalar_lea.hbm %s0, %s19
      %s21 = sshll.u32 [#allocation2], 4
      %s22 = int_to_ptr.vmem [resolvable:$true] %s21
      %27 = dma.hbm_to_vmem [thread:$0]  %s20, 256, %s22, [#allocation3], 128, 128, 8
    $region5: #{tpu_custom_call.1} parent=1 // pred_fallthru
      _
    // Predicated region
    $region6: #{tpu_custom_call.1} parent=1 // pred_check
      _
    $region7: #{tpu_custom_call.1} parent=1 // pred_check_branch
      %29 = sbr.rel (0) target = $region9
    $region8: #{tpu_custom_call.1} parent=1 // pred_region
      %s30 = sadd.s32 0, 0
      %p31 = scmp.lt.s32.totalorder %s30, 0
      %s32 = scalar_select %p31, %s30, 0
      %s33 = smul.u32 2, %s32
      %s35 = ssub.s32 256, 256
      %36 = vsyncadd [#allocation6], %s35
      %s37 = smul.addr %s33, 128
      %s38 = scalar_lea.hbm %s1, %s37
      %s39 = sshll.u32 [#allocation5], 4
      %s40 = int_to_ptr.vmem [resolvable:$true] %s39
      %45 = dma.hbm_to_vmem [thread:$0]  %s38, 256, %s40, [#allocation6], 128, 128, 8
    $region9: #{tpu_custom_call.1} parent=1 // pred_fallthru
      _
    // Predicated region
    $region10: #{tpu_custom_call.1} parent=1 // pred_check
      _
    $region11: #{tpu_custom_call.1} parent=1 // pred_check_branch
      %47 = sbr.rel (0) target = $region13
    $region12: #{tpu_custom_call.1} parent=1 // pred_region
      %48 = dma.done [#allocation3], 256
    $region13: #{tpu_custom_call.1} parent=1 // pred_fallthru
      _
    // Predicated region
    $region14: #{tpu_custom_call.1} parent=1 // pred_check
      _
    $region15: #{tpu_custom_call.1} parent=1 // pred_check_branch
      %50 = sbr.rel (0) target = $region17
    $region16: #{tpu_custom_call.1} parent=1 // pred_region
      %51 = dma.done [#allocation6], 256
    $region17: #{tpu_custom_call.1} parent=1 // pred_fallthru
      _
    %s52 = sadd.s32 0, 0
    %p53 = scmp.lt.s32.totalorder %s52, 0
    %s54 = scalar_select %p53, %s52, 0
    %s55 = smul.u32 2, %s54
    %s56 = sadd.s32 0, 0
    %p57 = scmp.lt.s32.totalorder %s56, 0
    %s58 = scalar_select %p57, %s56, 0
    %s59 = smul.u32 2, %s58
    %p60 = scmp.eq.s32.totalorder 0, 0
    // Predicated region
    $region18: #{tpu_custom_call.1} parent=1 // pred_check
      %p61 = pneg %p60
    $region19: #{tpu_custom_call.1} parent=1 // pred_check_branch
      %63 = sbr.rel (%p61) target = $region21
    $region20: #{tpu_custom_call.1} parent=1 // pred_region
      %64 = vst [vmem:[#allocation7] sm:$0xff] 0.0
      %65 = vst [vmem:[#allocation7 + $0x8] sm:$0xff] 0.0
      %66 = vst [vmem:[#allocation7 + $0x10] sm:$0xff] 0.0
    $region21: #{tpu_custom_call.1} parent=1 // pred_fallthru
      _
    %v67 = vld [vmem:[#allocation2] sm:$0xff]
    %v68 = vld [vmem:[#allocation2 + $0x8] sm:$0xff]
    %v69 = vmul.f32 %v67, 0.5
    %v70 = vmul.f32 %v68, 0.5
    %v71 = vtanh.pop %v69
    %v72 = vtanh.pop %v70
    %v73 = vmul.f32 %v71, 0.5
    %v74 = vmul.f32 %v72, 0.5
    %v75 = vadd.f32 %v73, 0.5
    %v76 = vadd.f32 %v74, 0.5
    %v77 = vld [vmem:[#allocation5] sm:$0xff]
    %v78 = vld [vmem:[#allocation5 + $0x8] sm:$0xff]
    %s79 = sadd.s32 0, 0
    %s80 = smul.u32 %s79, 2048
    %s81 = sadd.s32 %s80, 2048
    %p82 = scmp.gt.s32.totalorder %s81, 2048
    %p83 = scmp.le.s32.totalorder %s81, 2048
    // Predicated region
    $region22: #{tpu_custom_call.1} parent=1 // pred_check
      %p84 = pneg %p83
    $region23: #{tpu_custom_call.1} parent=1 // pred_check_branch
      %86 = sbr.rel (%p84) target = $region25
    $region24: #{tpu_custom_call.1} parent=1 // pred_region
      %v87 = vld [vmem:[#allocation7] sm:$0xff]
      %v88 = vmul.f32 %v75, %v77
      %v89 = vmul.f32 %v76, %v78
      %v90 = vadd.f32 %v88, %v89
      %v91 = vadd.f32 %v87, %v90
      %92 = vst [vmem:[#allocation7] sm:$0xff] %v91
      %s93 = scalar_lea.vmem [#allocation7], 8
      %v94 = vld [vmem:[%s93] sm:$0xff]
      %v95 = vadd.f32 %v75, %v76
      %v96 = vadd.f32 %v94, %v95
      %97 = vst [vmem:[%s93] sm:$0xff] %v96
      %s98 = scalar_lea.vmem [#allocation7], 16
      %v99 = vld [vmem:[%s98] sm:$0xff]
      %v100 = vadd.f32 %v77, %v78
      %v101 = vadd.f32 %v99, %v100
      %102 = vst [vmem:[%s98] sm:$0xff] %v101
    $region25: #{tpu_custom_call.1} parent=1 // pred_fallthru
      _
    // Predicated region
    $region26: #{tpu_custom_call.1} parent=1 // pred_check
      %p103 = pneg %p82
    $region27: #{tpu_custom_call.1} parent=1 // pred_check_branch
      %105 = sbr.rel (%p103) target = $region29
    $region28: #{tpu_custom_call.1} parent=1 // pred_region
      %v106 = vlaneseq
      %v107 = vshrl.u32 %v106, 7
      %v108 = vadd.s32 %v107, 8
      %v109 = vlaneseq
      %v110 = vand.u32 %v109, 127
      %v111 = vmul.u32 %v107, 128
      %v112 = vmul.u32 %v108, 128
      %v113 = vstv %s80
      %v114 = vadd.s32 %v113, %v111
      %v115 = vadd.s32 %v113, %v112
      %v116 = vadd.s32 %v114, %v110
      %v117 = vadd.s32 %v115, %v110
      %vm118 = vcmp.lt.s32.totalorder %v116, 2048
      %vm119 = vcmp.lt.s32.totalorder %v117, 2048
      %v120 = vsel %vm118, %v75, 0.0
      %v121 = vsel %vm119, %v76, 0.0
      %v122 = vsel %vm118, %v77, 0.0
      %v123 = vsel %vm119, %v78, 0.0
      %v124 = vld [vmem:[#allocation7] sm:$0xff]
      %v125 = vmul.f32 %v120, %v122
      %v126 = vmul.f32 %v121, %v123
      %v127 = vadd.f32 %v125, %v126
      %v128 = vadd.f32 %v124, %v127
      %129 = vst [vmem:[#allocation7] sm:$0xff] %v128
      %s130 = scalar_lea.vmem [#allocation7], 8
      %v131 = vld [vmem:[%s130] sm:$0xff]
      %v132 = vadd.f32 %v120, %v121
      %v133 = vadd.f32 %v131, %v132
      %134 = vst [vmem:[%s130] sm:$0xff] %v133
      %s135 = scalar_lea.vmem [#allocation7], 16
      %v136 = vld [vmem:[%s135] sm:$0xff]
      %v137 = vadd.f32 %v122, %v123
      %v138 = vadd.f32 %v136, %v137
      %139 = vst [vmem:[%s135] sm:$0xff] %v138
    $region29: #{tpu_custom_call.1} parent=1 // pred_fallthru
      _
    // Predicated region
    $region30: #{tpu_custom_call.1} parent=1 // pred_check
      _
    $region31: #{tpu_custom_call.1} parent=1 // pred_check_branch
      %141 = sbr.rel (0) target = $region33
    $region32: #{tpu_custom_call.1} parent=1 // pred_region
      %s143 = ssub.s32 384, 384
      %144 = vsyncadd [#allocation4], %s143
      %s145 = sshll.u32 [#allocation7], 4
      %s146 = int_to_ptr.vmem [resolvable:$true] %s145
      %151 = dma.vmem_to_hbm [thread:$0]  %s146, 384, %s2, [#allocation4], 128, 128, 8
    $region33: #{tpu_custom_call.1} parent=1 // pred_fallthru
      _
    // Predicated region
    $region34: #{tpu_custom_call.1} parent=1 // pred_check
      _
    $region35: #{tpu_custom_call.1} parent=1 // pred_check_branch
      %153 = sbr.rel (0) target = $region37
    $region36: #{tpu_custom_call.1} parent=1 // pred_region
      %154 = dma.done [#allocation4], 384
    $region37: #{tpu_custom_call.1} parent=1 // pred_fallthru
      _
    %155 = vsyncpa [#allocation3], 1
    %156 = vsyncpa [#allocation6], 1
    %157 = vsyncpa [#allocation4], 1

</llo_original>
